<compile_context>
chip_gen: v7x
topology: tpu7x:2x2x1
jax: 0.10.0
libtpu: 0.0.40
codegen_flags: <defaults>
</compile_context>

<pallas_src>
import jax
import jax.numpy as jnp
from jax.experimental import pallas as pl
from jax.experimental.pallas import tpu as pltpu


def _round_up(x, m):
    return ((x + m - 1) // m) * m


def _fused_mlp_kernel(*refs):
    # refs = (x_ref, w0, b0, w1, b1, ..., w_{L-1}, b_{L-1}, o_ref)
    x_ref = refs[0]
    o_ref = refs[-1]
    wb_refs = refs[1:-1]
    n_layers = len(wb_refs) // 2

    h = x_ref[...]                      # (tm, K) bfloat16 (already bf16 in HBM)
    for i in range(n_layers):
        w = wb_refs[2 * i][...]         # (K_i, N_i) bfloat16
        b = wb_refs[2 * i + 1][...]     # (1, N_i)   float32
        lhs = h if h.dtype == jnp.bfloat16 else h.astype(jnp.bfloat16)
        y = jnp.dot(lhs, w, preferred_element_type=jnp.float32) + b
        if i != n_layers - 1:
            y = jnp.maximum(y, 0.0)     # ReLU on hidden layers only
        h = y
    o_ref[...] = h.astype(o_ref.dtype)


def _choose_batch_tile(M):
    """Pick the batch tile.

    * Small batches: one block, rounded up to a sublane multiple (8).
    * Large batches: 128..1024-row tiles (big tiles hit the HBM roofline and
      amortize per-step pipeline overhead) with >= 2 grid steps so v7x's two
      TensorCores both get work under dimension_semantics=("parallel",).
    """
    if M <= 256:
        return _round_up(max(M, 1), 8)
    half = (M + 1) // 2
    return max(128, min(1024, (half // 128) * 128))


def fused_mlp(x2d, params):
    """Whole-MLP forward in one pallas_call; intermediates never touch HBM."""
    M, K = x2d.shape
    n_out = params[-1][1].shape[0]

    # HBM-bound on x: stream it as bf16 (halves the dominant DMA).  All
    # accumulation stays f32 inside the kernel.
    x2d = x2d.astype(jnp.bfloat16)

    tm = _choose_batch_tile(M)
    Mp = _round_up(M, tm)
    if Mp != M:
        x2d = jnp.pad(x2d, ((0, Mp - M), (0, 0)))   # zero rows; sliced off below
    grid = (Mp // tm,)

    flat_inputs = [x2d]
    in_specs = [pl.BlockSpec((tm, K), lambda i: (i, 0))]
    for w, b in params:
        flat_inputs.append(w)
        flat_inputs.append(b.reshape(1, -1))
        # Constant block index -> weights/biases stay resident in VMEM
        # (Pallas skips the re-fetch when the block index doesn't change).
        in_specs.append(pl.BlockSpec(w.shape, lambda i: (0, 0)))
        in_specs.append(pl.BlockSpec((1, b.shape[0]), lambda i: (0, 0)))
    out_specs = pl.BlockSpec((tm, n_out), lambda i: (i, 0))

    # Cost hint for XLA's scheduler (x counted at its bf16 size).
    flops = 2 * Mp * sum(int(w.shape[0]) * int(w.shape[1]) for w, _ in params)
    weight_bytes = sum(int(w.size) * 2 + int(b.size) * 4 for w, b in params)
    bytes_accessed = Mp * K * 2 + weight_bytes + Mp * n_out * 4
    cost = pl.CostEstimate(flops=flops, transcendentals=0,
                           bytes_accessed=int(bytes_accessed))

    # Exact VMEM budget: double-buffered x/out tiles + (double-buffered)
    # resident weights + headroom for compiler scratch.  Even at tm=1024 this
    # is ~8 MiB — far under v7x's 64 MiB (and v5e/v6e's 128 MiB).
    vmem_bytes = (2 * tm * K * 2            # bf16 input tile, 2 buffers
                  + 2 * tm * n_out * 4      # f32 output tile, 2 buffers
                  + 2 * weight_bytes        # resident weights/biases
                  + (4 << 20))              # headroom
    vmem_bytes = int(max(vmem_bytes, 8 << 20))

    out = pl.pallas_call(
        _fused_mlp_kernel,
        out_shape=jax.ShapeDtypeStruct((Mp, n_out), jnp.float32),
        grid=grid,
        in_specs=in_specs,
        out_specs=out_specs,
        compiler_params=pltpu.CompilerParams(
            dimension_semantics=("parallel",),
            vmem_limit_bytes=vmem_bytes,
        ),
        cost_estimate=cost,
    )(*flat_inputs)
    return out[:M] if Mp != M else out


def init_basic_nn_params(key, input_size, hidden_size, hidden_layers,
                         div_layer_value, output_size):
    """Deterministic init mirroring nn.Linear default U(-1/sqrt(in), 1/sqrt(in))."""
    assert hidden_layers > 0
    dims = [input_size, hidden_size]
    h = hidden_size
    for _ in range(hidden_layers - 1):
        h = max(1, h // div_layer_value)
        dims.append(h)
    dims.append(output_size)

    params = []
    for i in range(len(dims) - 1):
        fan_in, fan_out = dims[i], dims[i + 1]
        key, kw, kb = jax.random.split(key, 3)
        bound = 1.0 / (fan_in ** 0.5)
        w = jax.random.uniform(kw, (fan_in, fan_out), jnp.float32, -bound, bound)
        b = jax.random.uniform(kb, (fan_out,), jnp.float32, -bound, bound)
        # Weights stored (in, out) and bf16 (halves HBM traffic, native MXU
        # rate); biases stay f32 and are added after the f32 accumulation.
        params.append((w.astype(jnp.bfloat16), b))
    return params


def basic_nn_forward(x, params):
    """nn.Flatten (NCHW) -> fused MLP.  Last layer has no ReLU (logits).

    Precision contract: matmul operands are bf16 (activations + weights) with
    f32 accumulation; logits are f32.  Differs slightly from PyTorch's fp32
    nn.Linear — document if logits feed a tie-sensitive consumer.
    """
    h = x.reshape(x.shape[0], -1)  # nn.Flatten()
    # Dropout: identity at inference time.
    return fused_mlp(h, params)


def ref_forward(x, params):
    """Pure-JAX reference mirroring the kernel math (bf16 operands, f32 acc)."""
    h = x.reshape(x.shape[0], -1).astype(jnp.bfloat16)
    for i, (w, b) in enumerate(params):
        h = jnp.dot(h.astype(jnp.bfloat16), w,
                    preferred_element_type=jnp.float32) + b
        if i != len(params) - 1:
            h = jnp.maximum(h, 0.0)
    return h


if __name__ == "__main__":
    # Module config (small, consistent with the PyTorch __init__):
    #   input  x: (batch=2, channels=4, H=16, W=16) -> input_size = 4*16*16 = 1024
    #   hidden_size=32, hidden_layers=2, div_layer_value=2, output_size=10
    B, C, H, W = 2, 4, 16, 16
    input_size = C * H * W
    hidden_size = 32
    hidden_layers = 2
    div_layer_value = 2
    output_size = 10

    key = jax.random.PRNGKey(0)
    key, kx = jax.random.split(key)
    x = jax.random.normal(kx, (B, C, H, W), jnp.float32)

    params = init_basic_nn_params(
        key, input_size, hidden_size, hidden_layers, div_layer_value, output_size
    )

    # Small batch: single padded block (grid of one step).
    logits = basic_nn_forward(x, params)
    jax.block_until_ready(logits)
    assert logits.shape == (B, output_size), logits.shape
    assert logits.dtype == jnp.float32
    ref = ref_forward(x, params)
    assert jnp.allclose(logits, ref, atol=2e-3, rtol=2e-3)

    # Larger, non-tile-divisible batch: exercises the padded multi-step grid
    # (tm=128, grid=3) used when scaling.
    key, kx2 = jax.random.split(key)
    x_big = jax.random.normal(kx2, (300, C, H, W), jnp.float32)
    logits_big = basic_nn_forward(x_big, params)
    jax.block_until_ready(logits_big)
    assert logits_big.shape == (300, output_size), logits_big.shape
    assert jnp.allclose(logits_big, ref_forward(x_big, params),
                        atol=2e-3, rtol=2e-3)

    print("KERNEL_OK")
</pallas_src>

<mosaic_0001>
module attributes {stable_mosaic.version = 11 : i64} {
  func.func @_fused_mlp_kernel(%arg0: i32, %arg1: memref<8x1024xbf16, #tpu.memory_space<vmem>>, %arg2: memref<1024x32xbf16, #tpu.memory_space<vmem>>, %arg3: memref<1x32xf32, #tpu.memory_space<vmem>>, %arg4: memref<32x16xbf16, #tpu.memory_space<vmem>>, %arg5: memref<1x16xf32, #tpu.memory_space<vmem>>, %arg6: memref<16x10xbf16, #tpu.memory_space<vmem>>, %arg7: memref<1x10xf32, #tpu.memory_space<vmem>>, %arg8: memref<8x10xf32, #tpu.memory_space<vmem>>) attributes {dimension_semantics = [#tpu.dimension_semantics<parallel>], iteration_bounds = array<i64: 1>, scalar_prefetch = 0 : i64, scratch_operands = 0 : i64, tpu.core_type = #tpu.core_type<tc>, window_params = [{transform_indices = @transform_0, window_bounds = array<i64: 8, 1024>}, {pipeline_mode = #tpu.pipeline_mode<synchronous>, transform_indices = @transform_1, window_bounds = array<i64: 1024, 32>}, {pipeline_mode = #tpu.pipeline_mode<synchronous>, transform_indices = @transform_2, window_bounds = array<i64: 1, 32>}, {pipeline_mode = #tpu.pipeline_mode<synchronous>, transform_indices = @transform_3, window_bounds = array<i64: 32, 16>}, {pipeline_mode = #tpu.pipeline_mode<synchronous>, transform_indices = @transform_4, window_bounds = array<i64: 1, 16>}, {pipeline_mode = #tpu.pipeline_mode<synchronous>, transform_indices = @transform_5, window_bounds = array<i64: 16, 10>}, {pipeline_mode = #tpu.pipeline_mode<synchronous>, transform_indices = @transform_6, window_bounds = array<i64: 1, 10>}, {transform_indices = @transform_7, window_bounds = array<i64: 8, 10>}]} {
    %c0 = arith.constant 0 : index
    %c0_0 = arith.constant 0 : index
    %0 = vector.load %arg1[%c0, %c0_0] : memref<8x1024xbf16, #tpu.memory_space<vmem>>, vector<8x1024xbf16>
    %c0_1 = arith.constant 0 : index
    %c0_2 = arith.constant 0 : index
    %1 = vector.load %arg2[%c0_1, %c0_2] : memref<1024x32xbf16, #tpu.memory_space<vmem>>, vector<1024x32xbf16>
    %c0_3 = arith.constant 0 : index
    %c0_4 = arith.constant 0 : index
    %2 = vector.load %arg3[%c0_3, %c0_4] : memref<1x32xf32, #tpu.memory_space<vmem>>, vector<1x32xf32>
    %cst = arith.constant dense<0.000000e+00> : vector<8x32xf32>
    %3 = tpu.matmul %0, %1, %cst {dimension_numbers = #tpu.dot_dimension_numbers<[1], [0], [0], [1], [0, 0, 1, 1], [], []>} : vector<8x1024xbf16>, vector<1024x32xbf16>, vector<8x32xf32> -> vector<8x32xf32>
    %4 = vector.broadcast %2 : vector<1x32xf32> to vector<8x32xf32>
    %5 = arith.addf %3, %4 : vector<8x32xf32>
    %cst_5 = arith.constant 0.000000e+00 : f32
    %6 = vector.broadcast %cst_5 : f32 to vector<8x32xf32>
    %7 = arith.maximumf %5, %6 : vector<8x32xf32>
    %c0_6 = arith.constant 0 : index
    %c0_7 = arith.constant 0 : index
    %8 = vector.load %arg4[%c0_6, %c0_7] : memref<32x16xbf16, #tpu.memory_space<vmem>>, vector<32x16xbf16>
    %c0_8 = arith.constant 0 : index
    %c0_9 = arith.constant 0 : index
    %9 = vector.load %arg5[%c0_8, %c0_9] : memref<1x16xf32, #tpu.memory_space<vmem>>, vector<1x16xf32>
    %10 = arith.truncf %7 : vector<8x32xf32> to vector<8x32xbf16>
    %cst_10 = arith.constant dense<0.000000e+00> : vector<8x16xf32>
    %11 = tpu.matmul %10, %8, %cst_10 {dimension_numbers = #tpu.dot_dimension_numbers<[1], [0], [0], [1], [0, 0, 1, 1], [], []>} : vector<8x32xbf16>, vector<32x16xbf16>, vector<8x16xf32> -> vector<8x16xf32>
    %12 = vector.broadcast %9 : vector<1x16xf32> to vector<8x16xf32>
    %13 = arith.addf %11, %12 : vector<8x16xf32>
    %cst_11 = arith.constant 0.000000e+00 : f32
    %14 = vector.broadcast %cst_11 : f32 to vector<8x16xf32>
    %15 = arith.maximumf %13, %14 : vector<8x16xf32>
    %c0_12 = arith.constant 0 : index
    %c0_13 = arith.constant 0 : index
    %16 = vector.load %arg6[%c0_12, %c0_13] : memref<16x10xbf16, #tpu.memory_space<vmem>>, vector<16x10xbf16>
    %c0_14 = arith.constant 0 : index
    %c0_15 = arith.constant 0 : index
    %17 = vector.load %arg7[%c0_14, %c0_15] : memref<1x10xf32, #tpu.memory_space<vmem>>, vector<1x10xf32>
    %18 = arith.truncf %15 : vector<8x16xf32> to vector<8x16xbf16>
    %cst_16 = arith.constant dense<0.000000e+00> : vector<8x10xf32>
    %19 = tpu.matmul %18, %16, %cst_16 {dimension_numbers = #tpu.dot_dimension_numbers<[1], [0], [0], [1], [0, 0, 1, 1], [], []>} : vector<8x16xbf16>, vector<16x10xbf16>, vector<8x10xf32> -> vector<8x10xf32>
    %20 = vector.broadcast %17 : vector<1x10xf32> to vector<8x10xf32>
    %21 = arith.addf %19, %20 : vector<8x10xf32>
    %c0_17 = arith.constant 0 : index
    %c0_18 = arith.constant 0 : index
    %22 = vector.load %arg8[%c0_17, %c0_18] : memref<8x10xf32, #tpu.memory_space<vmem>>, vector<8x10xf32>
    tpu.vector_store %arg8[%c0_17, %c0_18], %21 {strides = array<i32>} : memref<8x10xf32, #tpu.memory_space<vmem>>, vector<8x10xf32>,
    return
  }
  func.func @transform_0(%arg0: i32) -> (i32, i32) {
    %c0_i32 = arith.constant 0 : i32
    %c0_i32_0 = arith.constant 0 : i32
    return %arg0, %c0_i32 : i32, i32
  }
  func.func @transform_1(%arg0: i32) -> (i32, i32) {
    %c0_i32 = arith.constant 0 : i32
    %c0_i32_0 = arith.constant 0 : i32
    %c0_i32_1 = arith.constant 0 : i32
    return %c0_i32, %c0_i32_0 : i32, i32
  }
  func.func @transform_2(%arg0: i32) -> (i32, i32) {
    %c0_i32 = arith.constant 0 : i32
    %c0_i32_0 = arith.constant 0 : i32
    %c0_i32_1 = arith.constant 0 : i32
    return %c0_i32, %c0_i32_0 : i32, i32
  }
  func.func @transform_3(%arg0: i32) -> (i32, i32) {
    %c0_i32 = arith.constant 0 : i32
    %c0_i32_0 = arith.constant 0 : i32
    %c0_i32_1 = arith.constant 0 : i32
    return %c0_i32, %c0_i32_0 : i32, i32
  }
  func.func @transform_4(%arg0: i32) -> (i32, i32) {
    %c0_i32 = arith.constant 0 : i32
    %c0_i32_0 = arith.constant 0 : i32
    %c0_i32_1 = arith.constant 0 : i32
    return %c0_i32, %c0_i32_0 : i32, i32
  }
  func.func @transform_5(%arg0: i32) -> (i32, i32) {
    %c0_i32 = arith.constant 0 : i32
    %c0_i32_0 = arith.constant 0 : i32
    %c0_i32_1 = arith.constant 0 : i32
    return %c0_i32, %c0_i32_0 : i32, i32
  }
  func.func @transform_6(%arg0: i32) -> (i32, i32) {
    %c0_i32 = arith.constant 0 : i32
    %c0_i32_0 = arith.constant 0 : i32
    %c0_i32_1 = arith.constant 0 : i32
    return %c0_i32, %c0_i32_0 : i32, i32
  }
  func.func @transform_7(%arg0: i32) -> (i32, i32) {
    %c0_i32 = arith.constant 0 : i32
    %c0_i32_0 = arith.constant 0 : i32
    return %arg0, %c0_i32 : i32, i32
  }
}

</mosaic_0001>

<llo_original>
// kernel: tpu_custom_call.1
$region0: #{tpu_custom_call.1}
  #allocation0 [shape = 'u32[]', space=smem, size = 0x4, offset = 0x4, fixed_abs, tag = 'smem constant byte address 0x4 - core index']
  #allocation1 [shape = 'u32[144,128]{1,0:T(1,128)}', space=vmem, size = 0x12000, scoped, tag = 'internal scratch']
  %s0 = inlined_call_operand.vmem [shape: bf16[8,1024], index: 0, kind: input, shape index: {}]
  %s1 = inlined_call_operand.vmem [shape: bf16[1024,32], index: 1, kind: input, shape index: {}]
  %s2 = inlined_call_operand.vmem [shape: f32[1,32], index: 2, kind: input, shape index: {}]
  %s3 = inlined_call_operand.vmem [shape: bf16[32,16], index: 3, kind: input, shape index: {}]
  %s4 = inlined_call_operand.vmem [shape: f32[1,16], index: 4, kind: input, shape index: {}]
  %s5 = inlined_call_operand.vmem [shape: bf16[16,10], index: 5, kind: input, shape index: {}]
  %s6 = inlined_call_operand.vmem [shape: f32[1,10], index: 6, kind: input, shape index: {}]
  %s7 = inlined_call_operand.hbm [shape: f32[8,10], index: 7, kind: output, shape index: {}]
  %s8 = sld [smem:[#allocation0]]
  $region38: #{tpu_custom_call.1} parent=0
    _
  %s10 = ssub.s32 1, %s8
  %s11 = scalar_select 0, %s10, %s8
  $region1: #{tpu_custom_call.1} parent=0
    #allocation2 [shape = 'u8[4096]{0}', space=vmem, size = 0x1000, scoped, tag = 'output window, operand 0, single buffered']
    #allocation3 [shape = 's32[1]{0}', space=sflag, size = 0x4, scoped, tag = 'scoped memory for tpu_custom_call.1']
    %12 = vsyncpa [#allocation3], 0
    // Predicated region
    $region2: #{tpu_custom_call.1} parent=1 // pred_check
      _
    $region3: #{tpu_custom_call.1} parent=1 // pred_check_branch
      %14 = sbr.rel (0) target = $region5
    $region4: #{tpu_custom_call.1} parent=1 // pred_region
      _
    $region5: #{tpu_custom_call.1} parent=1 // pred_fallthru
      _
    // Predicated region
    $region6: #{tpu_custom_call.1} parent=1 // pred_check
      _
    $region7: #{tpu_custom_call.1} parent=1 // pred_check_branch
      %16 = sbr.rel (0) target = $region9
    $region8: #{tpu_custom_call.1} parent=1 // pred_region
      _
    $region9: #{tpu_custom_call.1} parent=1 // pred_fallthru
      _
    // Predicated region
    $region10: #{tpu_custom_call.1} parent=1 // pred_check
      _
    $region11: #{tpu_custom_call.1} parent=1 // pred_check_branch
      %18 = sbr.rel (0) target = $region13
    $region12: #{tpu_custom_call.1} parent=1 // pred_region
      _
    $region13: #{tpu_custom_call.1} parent=1 // pred_fallthru
      _
    // Predicated region
    $region14: #{tpu_custom_call.1} parent=1 // pred_check
      _
    $region15: #{tpu_custom_call.1} parent=1 // pred_check_branch
      %20 = sbr.rel (0) target = $region17
    $region16: #{tpu_custom_call.1} parent=1 // pred_region
      _
    $region17: #{tpu_custom_call.1} parent=1 // pred_fallthru
      _
    // Predicated region
    $region18: #{tpu_custom_call.1} parent=1 // pred_check
      _
    $region19: #{tpu_custom_call.1} parent=1 // pred_check_branch
      %22 = sbr.rel (0) target = $region21
    $region20: #{tpu_custom_call.1} parent=1 // pred_region
      _
    $region21: #{tpu_custom_call.1} parent=1 // pred_fallthru
      _
    // Predicated region
    $region22: #{tpu_custom_call.1} parent=1 // pred_check
      _
    $region23: #{tpu_custom_call.1} parent=1 // pred_check_branch
      %24 = sbr.rel (0) target = $region25
    $region24: #{tpu_custom_call.1} parent=1 // pred_region
      _
    $region25: #{tpu_custom_call.1} parent=1 // pred_fallthru
      _
    // Predicated region
    $region26: #{tpu_custom_call.1} parent=1 // pred_check
      _
    $region27: #{tpu_custom_call.1} parent=1 // pred_check_branch
      %26 = sbr.rel (0) target = $region29
    $region28: #{tpu_custom_call.1} parent=1 // pred_region
      _
    $region29: #{tpu_custom_call.1} parent=1 // pred_fallthru
      _
    %v28 = vld [vmem:[%s0] sm:$0xff]
    %v29 = vld [vmem:[%s0 + $0x8] sm:$0xff]
    %v30 = vld [vmem:[%s0 + $0x10] sm:$0xff]
    %v31 = vld [vmem:[%s0 + $0x18] sm:$0xff]
    %v32 = vld [vmem:[%s1] sm:$0xf]
    %v33 = vld [vmem:[%s1 + $0x4] sm:$0xf]
    %v34 = vld [vmem:[%s1 + $0x8] sm:$0xf]
    %v35 = vld [vmem:[%s1 + $0xc] sm:$0xf]
    %v36 = vld [vmem:[%s1 + $0x10] sm:$0xf]
    %v37 = vld [vmem:[%s1 + $0x14] sm:$0xf]
    %v38 = vld [vmem:[%s1 + $0x18] sm:$0xf]
    %v39 = vld [vmem:[%s1 + $0x1c] sm:$0xf]
    %v40 = vld [vmem:[%s1 + $0x20] sm:$0xf]
    %v41 = vld [vmem:[%s1 + $0x24] sm:$0xf]
    %v42 = vld [vmem:[%s1 + $0x28] sm:$0xf]
    %v43 = vld [vmem:[%s1 + $0x2c] sm:$0xf]
    %v44 = vld [vmem:[%s1 + $0x30] sm:$0xf]
    %v45 = vld [vmem:[%s1 + $0x34] sm:$0xf]
    %v46 = vld [vmem:[%s1 + $0x38] sm:$0xf]
    %v47 = vld [vmem:[%s1 + $0x3c] sm:$0xf]
    %v48 = vld [vmem:[%s1 + $0x40] sm:$0xf]
    %v49 = vld [vmem:[%s1 + $0x44] sm:$0xf]
    %v50 = vld [vmem:[%s1 + $0x48] sm:$0xf]
    %v51 = vld [vmem:[%s1 + $0x4c] sm:$0xf]
    %v52 = vld [vmem:[%s1 + $0x50] sm:$0xf]
    %v53 = vld [vmem:[%s1 + $0x54] sm:$0xf]
    %v54 = vld [vmem:[%s1 + $0x58] sm:$0xf]
    %v55 = vld [vmem:[%s1 + $0x5c] sm:$0xf]
    %v56 = vld [vmem:[%s1 + $0x60] sm:$0xf]
    %v57 = vld [vmem:[%s1 + $0x64] sm:$0xf]
    %v58 = vld [vmem:[%s1 + $0x68] sm:$0xf]
    %v59 = vld [vmem:[%s1 + $0x6c] sm:$0xf]
    %v60 = vld [vmem:[%s1 + $0x70] sm:$0xf]
    %v61 = vld [vmem:[%s1 + $0x74] sm:$0xf]
    %v62 = vld [vmem:[%s1 + $0x78] sm:$0xf]
    %v63 = vld [vmem:[%s1 + $0x7c] sm:$0xf]
    %v64 = vld [vmem:[%s1 + $0x80] sm:$0xf]
    %v65 = vld [vmem:[%s1 + $0x84] sm:$0xf]
    %v66 = vld [vmem:[%s1 + $0x88] sm:$0xf]
    %v67 = vld [vmem:[%s1 + $0x8c] sm:$0xf]
    %v68 = vld [vmem:[%s1 + $0x90] sm:$0xf]
    %v69 = vld [vmem:[%s1 + $0x94] sm:$0xf]
    %v70 = vld [vmem:[%s1 + $0x98] sm:$0xf]
    %v71 = vld [vmem:[%s1 + $0x9c] sm:$0xf]
    %v72 = vld [vmem:[%s1 + $0xa0] sm:$0xf]
    %v73 = vld [vmem:[%s1 + $0xa4] sm:$0xf]
    %v74 = vld [vmem:[%s1 + $0xa8] sm:$0xf]
    %v75 = vld [vmem:[%s1 + $0xac] sm:$0xf]
    %v76 = vld [vmem:[%s1 + $0xb0] sm:$0xf]
    %v77 = vld [vmem:[%s1 + $0xb4] sm:$0xf]
    %v78 = vld [vmem:[%s1 + $0xb8] sm:$0xf]
    %v79 = vld [vmem:[%s1 + $0xbc] sm:$0xf]
    %v80 = vld [vmem:[%s1 + $0xc0] sm:$0xf]
    %v81 = vld [vmem:[%s1 + $0xc4] sm:$0xf]
    %v82 = vld [vmem:[%s1 + $0xc8] sm:$0xf]
    %v83 = vld [vmem:[%s1 + $0xcc] sm:$0xf]
    %v84 = vld [vmem:[%s1 + $0xd0] sm:$0xf]
    %v85 = vld [vmem:[%s1 + $0xd4] sm:$0xf]
    %v86 = vld [vmem:[%s1 + $0xd8] sm:$0xf]
    %v87 = vld [vmem:[%s1 + $0xdc] sm:$0xf]
    %v88 = vld [vmem:[%s1 + $0xe0] sm:$0xf]
    %v89 = vld [vmem:[%s1 + $0xe4] sm:$0xf]
    %v90 = vld [vmem:[%s1 + $0xe8] sm:$0xf]
    %v91 = vld [vmem:[%s1 + $0xec] sm:$0xf]
    %v92 = vld [vmem:[%s1 + $0xf0] sm:$0xf]
    %v93 = vld [vmem:[%s1 + $0xf4] sm:$0xf]
    %v94 = vld [vmem:[%s1 + $0xf8] sm:$0xf]
    %v95 = vld [vmem:[%s1 + $0xfc] sm:$0xf]
    %v96 = vld [vmem:[%s1 + $0x100] sm:$0xf]
    %v97 = vld [vmem:[%s1 + $0x104] sm:$0xf]
    %v98 = vld [vmem:[%s1 + $0x108] sm:$0xf]
    %v99 = vld [vmem:[%s1 + $0x10c] sm:$0xf]
    %v100 = vld [vmem:[%s1 + $0x110] sm:$0xf]
    %v101 = vld [vmem:[%s1 + $0x114] sm:$0xf]
    %v102 = vld [vmem:[%s1 + $0x118] sm:$0xf]
    %v103 = vld [vmem:[%s1 + $0x11c] sm:$0xf]
    %v104 = vld [vmem:[%s1 + $0x120] sm:$0xf]
    %v105 = vld [vmem:[%s1 + $0x124] sm:$0xf]
    %v106 = vld [vmem:[%s1 + $0x128] sm:$0xf]
    %v107 = vld [vmem:[%s1 + $0x12c] sm:$0xf]
    %v108 = vld [vmem:[%s1 + $0x130] sm:$0xf]
    %v109 = vld [vmem:[%s1 + $0x134] sm:$0xf]
    %v110 = vld [vmem:[%s1 + $0x138] sm:$0xf]
    %v111 = vld [vmem:[%s1 + $0x13c] sm:$0xf]
    %v112 = vld [vmem:[%s1 + $0x140] sm:$0xf]
    %v113 = vld [vmem:[%s1 + $0x144] sm:$0xf]
    %v114 = vld [vmem:[%s1 + $0x148] sm:$0xf]
    %v115 = vld [vmem:[%s1 + $0x14c] sm:$0xf]
    %v116 = vld [vmem:[%s1 + $0x150] sm:$0xf]
    %v117 = vld [vmem:[%s1 + $0x154] sm:$0xf]
    %v118 = vld [vmem:[%s1 + $0x158] sm:$0xf]
    %v119 = vld [vmem:[%s1 + $0x15c] sm:$0xf]
    %v120 = vld [vmem:[%s1 + $0x160] sm:$0xf]
    %v121 = vld [vmem:[%s1 + $0x164] sm:$0xf]
    %v122 = vld [vmem:[%s1 + $0x168] sm:$0xf]
    %v123 = vld [vmem:[%s1 + $0x16c] sm:$0xf]
    %v124 = vld [vmem:[%s1 + $0x170] sm:$0xf]
    %v125 = vld [vmem:[%s1 + $0x174] sm:$0xf]
    %v126 = vld [vmem:[%s1 + $0x178] sm:$0xf]
    %v127 = vld [vmem:[%s1 + $0x17c] sm:$0xf]
    %v128 = vld [vmem:[%s1 + $0x180] sm:$0xf]
    %v129 = vld [vmem:[%s1 + $0x184] sm:$0xf]
    %v130 = vld [vmem:[%s1 + $0x188] sm:$0xf]
    %v131 = vld [vmem:[%s1 + $0x18c] sm:$0xf]
    %v132 = vld [vmem:[%s1 + $0x190] sm:$0xf]
    %v133 = vld [vmem:[%s1 + $0x194] sm:$0xf]
    %v134 = vld [vmem:[%s1 + $0x198] sm:$0xf]
    %v135 = vld [vmem:[%s1 + $0x19c] sm:$0xf]
    %v136 = vld [vmem:[%s1 + $0x1a0] sm:$0xf]
    %v137 = vld [vmem:[%s1 + $0x1a4] sm:$0xf]
    %v138 = vld [vmem:[%s1 + $0x1a8] sm:$0xf]
    %v139 = vld [vmem:[%s1 + $0x1ac] sm:$0xf]
    %v140 = vld [vmem:[%s1 + $0x1b0] sm:$0xf]
    %v141 = vld [vmem:[%s1 + $0x1b4] sm:$0xf]
    %v142 = vld [vmem:[%s1 + $0x1b8] sm:$0xf]
    %v143 = vld [vmem:[%s1 + $0x1bc] sm:$0xf]
    %v144 = vld [vmem:[%s1 + $0x1c0] sm:$0xf]
    %v145 = vld [vmem:[%s1 + $0x1c4] sm:$0xf]
    %v146 = vld [vmem:[%s1 + $0x1c8] sm:$0xf]
    %v147 = vld [vmem:[%s1 + $0x1cc] sm:$0xf]
    %v148 = vld [vmem:[%s1 + $0x1d0] sm:$0xf]
    %v149 = vld [vmem:[%s1 + $0x1d4] sm:$0xf]
    %v150 = vld [vmem:[%s1 + $0x1d8] sm:$0xf]
    %v151 = vld [vmem:[%s1 + $0x1dc] sm:$0xf]
    %v152 = vld [vmem:[%s1 + $0x1e0] sm:$0xf]
    %v153 = vld [vmem:[%s1 + $0x1e4] sm:$0xf]
    %v154 = vld [vmem:[%s1 + $0x1e8] sm:$0xf]
    %v155 = vld [vmem:[%s1 + $0x1ec] sm:$0xf]
    %v156 = vld [vmem:[%s1 + $0x1f0] sm:$0xf]
    %v157 = vld [vmem:[%s1 + $0x1f4] sm:$0xf]
    %v158 = vld [vmem:[%s1 + $0x1f8] sm:$0xf]
    %v159 = vld [vmem:[%s1 + $0x1fc] sm:$0xf]
    %v160 = vld [vmem:[%s2] sm:$0x1]
    %v162 = vlaneseq
    %v163 = vshrl.u32 %v162, 7
    %v164 = vsub.s32 0, %v163
    %v165 = vrot.slane %v160, %v164
    %v171 = vunpack.c.l.b16 %v28
    %v172 = vunpack.c.h.b16 %v28
    %v173 = vunpack.c.l.b16 %v29
    %v174 = vunpack.c.h.b16 %v29
    %v175 = vunpack.c.l.b16 %v30
    %v176 = vunpack.c.h.b16 %v30
    %v177 = vunpack.c.l.b16 %v31
    %v178 = vunpack.c.h.b16 %v31
    %v179 = vpack.c.b16 %v171, %v171
    %v180 = vpack.c.b16 %v172, %v172
    %v181 = vpack.c.b16 %v173, %v173
    %v182 = vpack.c.b16 %v174, %v174
    %v183 = vpack.c.b16 %v175, %v175
    %v184 = vpack.c.b16 %v176, %v176
    %v185 = vpack.c.b16 %v177, %v177
    %v186 = vpack.c.b16 %v178, %v178
    %v323 = vunpack.c.l.b16 %v32
    %v324 = vunpack.c.l.b16 %v33
    %v325 = vunpack.c.l.b16 %v34
    %v326 = vunpack.c.l.b16 %v35
    %v327 = vunpack.c.l.b16 %v36
    %v328 = vunpack.c.l.b16 %v37
    %v329 = vunpack.c.l.b16 %v38
    %v330 = vunpack.c.l.b16 %v39
    %v331 = vunpack.c.l.b16 %v40
    %v332 = vunpack.c.l.b16 %v41
    %v333 = vunpack.c.l.b16 %v42
    %v334 = vunpack.c.l.b16 %v43
    %v335 = vunpack.c.l.b16 %v44
    %v336 = vunpack.c.l.b16 %v45
    %v337 = vunpack.c.l.b16 %v46
    %v338 = vunpack.c.l.b16 %v47
    %v339 = vunpack.c.l.b16 %v48
    %v340 = vunpack.c.l.b16 %v49
    %v341 = vunpack.c.l.b16 %v50
    %v342 = vunpack.c.l.b16 %v51
    %v343 = vunpack.c.l.b16 %v52
    %v344 = vunpack.c.l.b16 %v53
    %v345 = vunpack.c.l.b16 %v54
    %v346 = vunpack.c.l.b16 %v55
    %v347 = vunpack.c.l.b16 %v56
    %v348 = vunpack.c.l.b16 %v57
    %v349 = vunpack.c.l.b16 %v58
    %v350 = vunpack.c.l.b16 %v59
    %v351 = vunpack.c.l.b16 %v60
    %v352 = vunpack.c.l.b16 %v61
    %v353 = vunpack.c.l.b16 %v62
    %v354 = vunpack.c.l.b16 %v63
    %v355 = vunpack.c.l.b16 %v64
    %v356 = vunpack.c.l.b16 %v65
    %v357 = vunpack.c.l.b16 %v66
    %v358 = vunpack.c.l.b16 %v67
    %v359 = vunpack.c.l.b16 %v68
    %v360 = vunpack.c.l.b16 %v69
    %v361 = vunpack.c.l.b16 %v70
    %v362 = vunpack.c.l.b16 %v71
    %v363 = vunpack.c.l.b16 %v72
    %v364 = vunpack.c.l.b16 %v73
    %v365 = vunpack.c.l.b16 %v74
    %v366 = vunpack.c.l.b16 %v75
    %v367 = vunpack.c.l.b16 %v76
    %v368 = vunpack.c.l.b16 %v77
    %v369 = vunpack.c.l.b16 %v78
    %v370 = vunpack.c.l.b16 %v79
    %v371 = vunpack.c.l.b16 %v80
    %v372 = vunpack.c.l.b16 %v81
    %v373 = vunpack.c.l.b16 %v82
    %v374 = vunpack.c.l.b16 %v83
    %v375 = vunpack.c.l.b16 %v84
    %v376 = vunpack.c.l.b16 %v85
    %v377 = vunpack.c.l.b16 %v86
    %v378 = vunpack.c.l.b16 %v87
    %v379 = vunpack.c.l.b16 %v88
    %v380 = vunpack.c.l.b16 %v89
    %v381 = vunpack.c.l.b16 %v90
    %v382 = vunpack.c.l.b16 %v91
    %v383 = vunpack.c.l.b16 %v92
    %v384 = vunpack.c.l.b16 %v93
    %v385 = vunpack.c.l.b16 %v94
    %v386 = vunpack.c.l.b16 %v95
    %v387 = vunpack.c.l.b16 %v96
    %v388 = vunpack.c.l.b16 %v97
    %v389 = vunpack.c.l.b16 %v98
    %v390 = vunpack.c.l.b16 %v99
    %v391 = vunpack.c.l.b16 %v100
    %v392 = vunpack.c.l.b16 %v101
    %v393 = vunpack.c.l.b16 %v102
    %v394 = vunpack.c.l.b16 %v103
    %v395 = vunpack.c.l.b16 %v104
    %v396 = vunpack.c.l.b16 %v105
    %v397 = vunpack.c.l.b16 %v106
    %v398 = vunpack.c.l.b16 %v107
    %v399 = vunpack.c.l.b16 %v108
    %v400 = vunpack.c.l.b16 %v109
    %v401 = vunpack.c.l.b16 %v110
    %v402 = vunpack.c.l.b16 %v111
    %v403 = vunpack.c.l.b16 %v112
    %v404 = vunpack.c.l.b16 %v113
    %v405 = vunpack.c.l.b16 %v114
    %v406 = vunpack.c.l.b16 %v115
    %v407 = vunpack.c.l.b16 %v116
    %v408 = vunpack.c.l.b16 %v117
    %v409 = vunpack.c.l.b16 %v118
    %v410 = vunpack.c.l.b16 %v119
    %v411 = vunpack.c.l.b16 %v120
    %v412 = vunpack.c.l.b16 %v121
    %v413 = vunpack.c.l.b16 %v122
    %v414 = vunpack.c.l.b16 %v123
    %v415 = vunpack.c.l.b16 %v124
    %v416 = vunpack.c.l.b16 %v125
    %v417 = vunpack.c.l.b16 %v126
    %v418 = vunpack.c.l.b16 %v127
    %v419 = vunpack.c.l.b16 %v128
    %v420 = vunpack.c.l.b16 %v129
    %v421 = vunpack.c.l.b16 %v130
    %v422 = vunpack.c.l.b16 %v131
    %v423 = vunpack.c.l.b16 %v132
    %v424 = vunpack.c.l.b16 %v133
    %v425 = vunpack.c.l.b16 %v134
    %v426 = vunpack.c.l.b16 %v135
    %v427 = vunpack.c.l.b16 %v136
    %v428 = vunpack.c.l.b16 %v137
    %v429 = vunpack.c.l.b16 %v138
    %v430 = vunpack.c.l.b16 %v139
    %v431 = vunpack.c.l.b16 %v140
    %v432 = vunpack.c.l.b16 %v141
    %v433 = vunpack.c.l.b16 %v142
    %v434 = vunpack.c.l.b16 %v143
    %v435 = vunpack.c.l.b16 %v144
    %v436 = vunpack.c.l.b16 %v145
    %v437 = vunpack.c.l.b16 %v146
    %v438 = vunpack.c.l.b16 %v147
    %v439 = vunpack.c.l.b16 %v148
    %v440 = vunpack.c.l.b16 %v149
    %v441 = vunpack.c.l.b16 %v150
    %v442 = vunpack.c.l.b16 %v151
    %v443 = vunpack.c.l.b16 %v152
    %v444 = vunpack.c.l.b16 %v153
    %v445 = vunpack.c.l.b16 %v154
    %v446 = vunpack.c.l.b16 %v155
    %v447 = vunpack.c.l.b16 %v156
    %v448 = vunpack.c.l.b16 %v157
    %v449 = vunpack.c.l.b16 %v158
    %v450 = vunpack.c.l.b16 %v159
    %v451 = vpack.c.b16 %v324, %v323
    %v452 = vpack.c.b16 %v326, %v325
    %v453 = vpack.c.b16 %v328, %v327
    %v454 = vpack.c.b16 %v330, %v329
    %v455 = vpack.c.b16 %v332, %v331
    %v456 = vpack.c.b16 %v334, %v333
    %v457 = vpack.c.b16 %v336, %v335
    %v458 = vpack.c.b16 %v338, %v337
    %v459 = vpack.c.b16 %v340, %v339
    %v460 = vpack.c.b16 %v342, %v341
    %v461 = vpack.c.b16 %v344, %v343
    %v462 = vpack.c.b16 %v346, %v345
    %v463 = vpack.c.b16 %v348, %v347
    %v464 = vpack.c.b16 %v350, %v349
    %v465 = vpack.c.b16 %v352, %v351
    %v466 = vpack.c.b16 %v354, %v353
    %v467 = vpack.c.b16 %v356, %v355
    %v468 = vpack.c.b16 %v358, %v357
    %v469 = vpack.c.b16 %v360, %v359
    %v470 = vpack.c.b16 %v362, %v361
    %v471 = vpack.c.b16 %v364, %v363
    %v472 = vpack.c.b16 %v366, %v365
    %v473 = vpack.c.b16 %v368, %v367
    %v474 = vpack.c.b16 %v370, %v369
    %v475 = vpack.c.b16 %v372, %v371
    %v476 = vpack.c.b16 %v374, %v373
    %v477 = vpack.c.b16 %v376, %v375
    %v478 = vpack.c.b16 %v378, %v377
    %v479 = vpack.c.b16 %v380, %v379
    %v480 = vpack.c.b16 %v382, %v381
    %v481 = vpack.c.b16 %v384, %v383
    %v482 = vpack.c.b16 %v386, %v385
    %v483 = vpack.c.b16 %v388, %v387
    %v484 = vpack.c.b16 %v390, %v389
    %v485 = vpack.c.b16 %v392, %v391
    %v486 = vpack.c.b16 %v394, %v393
    %v487 = vpack.c.b16 %v396, %v395
    %v488 = vpack.c.b16 %v398, %v397
    %v489 = vpack.c.b16 %v400, %v399
    %v490 = vpack.c.b16 %v402, %v401
    %v491 = vpack.c.b16 %v404, %v403
    %v492 = vpack.c.b16 %v406, %v405
    %v493 = vpack.c.b16 %v408, %v407
    %v494 = vpack.c.b16 %v410, %v409
    %v495 = vpack.c.b16 %v412, %v411
    %v496 = vpack.c.b16 %v414, %v413
    %v497 = vpack.c.b16 %v416, %v415
    %v498 = vpack.c.b16 %v418, %v417
    %v499 = vpack.c.b16 %v420, %v419
    %v500 = vpack.c.b16 %v422, %v421
    %v501 = vpack.c.b16 %v424, %v423
    %v502 = vpack.c.b16 %v426, %v425
    %v503 = vpack.c.b16 %v428, %v427
    %v504 = vpack.c.b16 %v430, %v429
    %v505 = vpack.c.b16 %v432, %v431
    %v506 = vpack.c.b16 %v434, %v433
    %v507 = vpack.c.b16 %v436, %v435
    %v508 = vpack.c.b16 %v438, %v437
    %v509 = vpack.c.b16 %v440, %v439
    %v510 = vpack.c.b16 %v442, %v441
    %v511 = vpack.c.b16 %v444, %v443
    %v512 = vpack.c.b16 %v446, %v445
    %v513 = vpack.c.b16 %v448, %v447
    %v514 = vpack.c.b16 %v450, %v449
    %579 = vmatprep.subr.bf16.mxu0 0
    %580 = vmatpush1.bf16.msra.mxu0 %v451
    %581 = vmatprep.subr.bf16.mxu0 0
    %582 = vmatpush1.bf16.msra.mxu0 %v452
    %583 = vmatprep.subr.bf16.mxu0 0
    %584 = vmatpush1.bf16.msra.mxu0 %v453
    %585 = vmatprep.subr.bf16.mxu0 0
    %586 = vmatpush1.bf16.msra.mxu0 %v454
    %587 = vmatprep.subr.bf16.mxu0 0
    %588 = vmatpush1.bf16.msra.mxu0 %v455
    %589 = vmatprep.subr.bf16.mxu0 0
    %590 = vmatpush1.bf16.msra.mxu0 %v456
    %591 = vmatprep.subr.bf16.mxu0 0
    %592 = vmatpush1.bf16.msra.mxu0 %v457
    %593 = vmatprep.subr.bf16.mxu0 0
    %594 = vmatpush1.bf16.msra.mxu0 %v458
    %595 = vmatprep.subr.bf16.mxu0 0
    %596 = vmatpush1.bf16.msra.mxu0 %v459
    %597 = vmatprep.subr.bf16.mxu0 0
    %598 = vmatpush1.bf16.msra.mxu0 %v460
    %599 = vmatprep.subr.bf16.mxu0 0
    %600 = vmatpush1.bf16.msra.mxu0 %v461
    %601 = vmatprep.subr.bf16.mxu0 0
    %602 = vmatpush1.bf16.msra.mxu0 %v462
    %603 = vmatprep.subr.bf16.mxu0 0
    %604 = vmatpush1.bf16.msra.mxu0 %v463
    %605 = vmatprep.subr.bf16.mxu0 0
    %606 = vmatpush1.bf16.msra.mxu0 %v464
    %607 = vmatprep.subr.bf16.mxu0 0
    %608 = vmatpush1.bf16.msra.mxu0 %v465
    %609 = vmatprep.subr.bf16.mxu0 0
    %610 = vmatpush1.bf16.msra.mxu0 %v466
    %611 = vmatprep.mubr.bf16.mxu0 %v180
    %612 = vmatmul.mubr.bf16.gmra.mrb[0].mxu0 %v179
    %v613 = vpop.f32.mrb[0].mxu0
    %v614 = vadd.f32 %v165, %v613
    %v615 = vpop.f32.mrb[0].mxu0
    %v616 = vpop.f32.mrb[0].mxu0
    %v617 = vpop.f32.mrb[0].mxu0
    %618 = vdwg.mxu0
    %619 = vmatprep.subr.bf16.mxu0 0
    %620 = vmatpush1.bf16.msra.mxu0 %v467
    %621 = vmatprep.subr.bf16.mxu0 0
    %622 = vmatpush1.bf16.msra.mxu0 %v468
    %623 = vmatprep.subr.bf16.mxu0 0
    %624 = vmatpush1.bf16.msra.mxu0 %v469
    %625 = vmatprep.subr.bf16.mxu0 0
    %626 = vmatpush1.bf16.msra.mxu0 %v470
    %627 = vmatprep.subr.bf16.mxu0 0
    %628 = vmatpush1.bf16.msra.mxu0 %v471
    %629 = vmatprep.subr.bf16.mxu0 0
    %630 = vmatpush1.bf16.msra.mxu0 %v472
    %631 = vmatprep.subr.bf16.mxu0 0
    %632 = vmatpush1.bf16.msra.mxu0 %v473
    %633 = vmatprep.subr.bf16.mxu0 0
    %634 = vmatpush1.bf16.msra.mxu0 %v474
    %635 = vmatprep.subr.bf16.mxu0 0
    %636 = vmatpush1.bf16.msra.mxu0 %v475
    %637 = vmatprep.subr.bf16.mxu0 0
    %638 = vmatpush1.bf16.msra.mxu0 %v476
    %639 = vmatprep.subr.bf16.mxu0 0
    %640 = vmatpush1.bf16.msra.mxu0 %v477
    %641 = vmatprep.subr.bf16.mxu0 0
    %642 = vmatpush1.bf16.msra.mxu0 %v478
    %643 = vmatprep.subr.bf16.mxu0 0
    %644 = vmatpush1.bf16.msra.mxu0 %v479
    %645 = vmatprep.subr.bf16.mxu0 0
    %646 = vmatpush1.bf16.msra.mxu0 %v480
    %647 = vmatprep.subr.bf16.mxu0 0
    %648 = vmatpush1.bf16.msra.mxu0 %v481
    %649 = vmatprep.subr.bf16.mxu0 0
    %650 = vmatpush1.bf16.msra.mxu0 %v482
    %651 = vmatprep.mubr.bf16.mxu0 %v182
    %652 = vmatmul.mubr.bf16.gmra.mrb[0].mxu0 %v181
    %v653 = vpop.f32.mrb[0].mxu0
    %v654 = vadd.f32 %v614, %v653
    %v655 = vpop.f32.mrb[0].mxu0
    %v656 = vpop.f32.mrb[0].mxu0
    %v657 = vpop.f32.mrb[0].mxu0
    %658 = vdwg.mxu0
    %659 = vmatprep.subr.bf16.mxu0 0
    %660 = vmatpush1.bf16.msra.mxu0 %v483
    %661 = vmatprep.subr.bf16.mxu0 0
    %662 = vmatpush1.bf16.msra.mxu0 %v484
    %663 = vmatprep.subr.bf16.mxu0 0
    %664 = vmatpush1.bf16.msra.mxu0 %v485
    %665 = vmatprep.subr.bf16.mxu0 0
    %666 = vmatpush1.bf16.msra.mxu0 %v486
    %667 = vmatprep.subr.bf16.mxu0 0
    %668 = vmatpush1.bf16.msra.mxu0 %v487
    %669 = vmatprep.subr.bf16.mxu0 0
    %670 = vmatpush1.bf16.msra.mxu0 %v488
    %671 = vmatprep.subr.bf16.mxu0 0
    %672 = vmatpush1.bf16.msra.mxu0 %v489
    %673 = vmatprep.subr.bf16.mxu0 0
    %674 = vmatpush1.bf16.msra.mxu0 %v490
    %675 = vmatprep.subr.bf16.mxu0 0
    %676 = vmatpush1.bf16.msra.mxu0 %v491
    %677 = vmatprep.subr.bf16.mxu0 0
    %678 = vmatpush1.bf16.msra.mxu0 %v492
    %679 = vmatprep.subr.bf16.mxu0 0
    %680 = vmatpush1.bf16.msra.mxu0 %v493
    %681 = vmatprep.subr.bf16.mxu0 0
    %682 = vmatpush1.bf16.msra.mxu0 %v494
    %683 = vmatprep.subr.bf16.mxu0 0
    %684 = vmatpush1.bf16.msra.mxu0 %v495
    %685 = vmatprep.subr.bf16.mxu0 0
    %686 = vmatpush1.bf16.msra.mxu0 %v496
    %687 = vmatprep.subr.bf16.mxu0 0
    %688 = vmatpush1.bf16.msra.mxu0 %v497
    %689 = vmatprep.subr.bf16.mxu0 0
    %690 = vmatpush1.bf16.msra.mxu0 %v498
    %691 = vmatprep.mubr.bf16.mxu0 %v184
    %692 = vmatmul.mubr.bf16.gmra.mrb[0].mxu0 %v183
    %v693 = vpop.f32.mrb[0].mxu0
    %v694 = vadd.f32 %v654, %v693
    %v695 = vpop.f32.mrb[0].mxu0
    %v696 = vpop.f32.mrb[0].mxu0
    %v697 = vpop.f32.mrb[0].mxu0
    %698 = vdwg.mxu0
    %699 = vmatprep.subr.bf16.mxu0 0
    %700 = vmatpush1.bf16.msra.mxu0 %v499
    %701 = vmatprep.subr.bf16.mxu0 0
    %702 = vmatpush1.bf16.msra.mxu0 %v500
    %703 = vmatprep.subr.bf16.mxu0 0
    %704 = vmatpush1.bf16.msra.mxu0 %v501
    %705 = vmatprep.subr.bf16.mxu0 0
    %706 = vmatpush1.bf16.msra.mxu0 %v502
    %707 = vmatprep.subr.bf16.mxu0 0
    %708 = vmatpush1.bf16.msra.mxu0 %v503
    %709 = vmatprep.subr.bf16.mxu0 0
    %710 = vmatpush1.bf16.msra.mxu0 %v504
    %711 = vmatprep.subr.bf16.mxu0 0
    %712 = vmatpush1.bf16.msra.mxu0 %v505
    %713 = vmatprep.subr.bf16.mxu0 0
    %714 = vmatpush1.bf16.msra.mxu0 %v506
    %715 = vmatprep.subr.bf16.mxu0 0
    %716 = vmatpush1.bf16.msra.mxu0 %v507
    %717 = vmatprep.subr.bf16.mxu0 0
    %718 = vmatpush1.bf16.msra.mxu0 %v508
    %719 = vmatprep.subr.bf16.mxu0 0
    %720 = vmatpush1.bf16.msra.mxu0 %v509
    %721 = vmatprep.subr.bf16.mxu0 0
    %722 = vmatpush1.bf16.msra.mxu0 %v510
    %723 = vmatprep.subr.bf16.mxu0 0
    %724 = vmatpush1.bf16.msra.mxu0 %v511
    %725 = vmatprep.subr.bf16.mxu0 0
    %726 = vmatpush1.bf16.msra.mxu0 %v512
    %727 = vmatprep.subr.bf16.mxu0 0
    %728 = vmatpush1.bf16.msra.mxu0 %v513
    %729 = vmatprep.subr.bf16.mxu0 0
    %730 = vmatpush1.bf16.msra.mxu0 %v514
    %731 = vmatprep.mubr.bf16.mxu0 %v186
    %732 = vmatmul.mubr.bf16.gmra.mrb[0].mxu0 %v185
    %v733 = vpop.f32.mrb[0].mxu0
    %v734 = vadd.f32 %v694, %v733
    %v735 = vpop.f32.mrb[0].mxu0
    %v736 = vpop.f32.mrb[0].mxu0
    %v737 = vpop.f32.mrb[0].mxu0
    %738 = vdwg.mxu0
    %v739 = vmax.f32 %v734, 0.0
    %v740 = vld [vmem:[%s3] sm:$0xf]
    %v741 = vld [vmem:[%s3 + $0x4] sm:$0xf]
    %v742 = vld [vmem:[%s3 + $0x8] sm:$0xf]
    %v743 = vld [vmem:[%s3 + $0xc] sm:$0xf]
    %v744 = vld [vmem:[%s4] sm:$0x1]
    %v745 = vpack.c.bf16 %v739, %v739
    %v747 = vlaneseq
    %v748 = vshrl.u32 %v747, 7
    %v749 = vsub.s32 0, %v748
    %v750 = vrot.slane %v744, %v749
    %v756 = vunpack.c.l.b16 %v740
    %v757 = vunpack.c.l.b16 %v741
    %v758 = vunpack.c.l.b16 %v742
    %v759 = vunpack.c.l.b16 %v743
    %v760 = vpack.c.b16 %v757, %v756
    %v761 = vpack.c.b16 %v759, %v758
    %vm764 = vcmask 261120
    %v766 = vsel %vm764, %v745, 0
    %768 = vmatprep.subr.bf16.mxu0 0
    %769 = vmatpush1.bf16.msra.mxu0 %v760
    %770 = vmatprep.subr.bf16.mxu0 0
    %771 = vmatpush1.bf16.msra.mxu0 %v761
    %772 = vmatprep.subr.bf16.mxu0 0
    %773 = vmatpush1.bf16.msra.mxu0 0
    %774 = vmatprep.subr.bf16.mxu0 0
    %775 = vmatpush1.bf16.msra.mxu0 0
    %776 = vmatprep.subr.bf16.mxu0 0
    %777 = vmatpush1.bf16.msra.mxu0 0
    %778 = vmatprep.subr.bf16.mxu0 0
    %779 = vmatpush1.bf16.msra.mxu0 0
    %780 = vmatprep.subr.bf16.mxu0 0
    %781 = vmatpush1.bf16.msra.mxu0 0
    %782 = vmatprep.subr.bf16.mxu0 0
    %783 = vmatpush1.bf16.msra.mxu0 0
    %784 = vmatprep.subr.bf16.mxu0 0
    %785 = vmatpush1.bf16.msra.mxu0 0
    %786 = vmatprep.subr.bf16.mxu0 0
    %787 = vmatpush1.bf16.msra.mxu0 0
    %788 = vmatprep.subr.bf16.mxu0 0
    %789 = vmatpush1.bf16.msra.mxu0 0
    %790 = vmatprep.subr.bf16.mxu0 0
    %791 = vmatpush1.bf16.msra.mxu0 0
    %792 = vmatprep.subr.bf16.mxu0 0
    %793 = vmatpush1.bf16.msra.mxu0 0
    %794 = vmatprep.subr.bf16.mxu0 0
    %795 = vmatpush1.bf16.msra.mxu0 0
    %796 = vmatprep.subr.bf16.mxu0 0
    %797 = vmatpush1.bf16.msra.mxu0 0
    %798 = vmatprep.subr.bf16.mxu0 0
    %799 = vmatpush1.bf16.msra.mxu0 0
    %800 = vmatprep.mubr.bf16.mxu0 0
    %801 = vmatmul.mubr.bf16.gmra.mrb[0].mxu0 %v766
    %v802 = vpop.f32.mrb[0].mxu0
    %v803 = vadd.f32 %v750, %v802
    %v804 = vpop.f32.mrb[0].mxu0
    %v805 = vpop.f32.mrb[0].mxu0
    %v806 = vpop.f32.mrb[0].mxu0
    %807 = vdwg.mxu0
    %v808 = vmax.f32 %v803, 0.0
    %v809 = vld [vmem:[%s5] sm:$0xf]
    %v810 = vld [vmem:[%s5 + $0x4] sm:$0xf]
    %v811 = vld [vmem:[%s6] sm:$0x1]
    %v812 = vpack.c.bf16 %v808, %v808
    %v814 = vlaneseq
    %v815 = vshrl.u32 %v814, 7
    %v816 = vsub.s32 0, %v815
    %v817 = vrot.slane %v811, %v816
    %v821 = vunpack.c.l.b16 %v809
    %v822 = vunpack.c.l.b16 %v810
    %v823 = vpack.c.b16 %v822, %v821
    %vm825 = vcmask 130048
    %v827 = vsel %vm825, %v812, 0
    %829 = vmatprep.subr.bf16.mxu0 0
    %830 = vmatpush1.bf16.msra.mxu0 %v823
    %831 = vmatprep.subr.bf16.mxu0 0
    %832 = vmatpush1.bf16.msra.mxu0 0
    %833 = vmatprep.subr.bf16.mxu0 0
    %834 = vmatpush1.bf16.msra.mxu0 0
    %835 = vmatprep.subr.bf16.mxu0 0
    %836 = vmatpush1.bf16.msra.mxu0 0
    %837 = vmatprep.subr.bf16.mxu0 0
    %838 = vmatpush1.bf16.msra.mxu0 0
    %839 = vmatprep.subr.bf16.mxu0 0
    %840 = vmatpush1.bf16.msra.mxu0 0
    %841 = vmatprep.subr.bf16.mxu0 0
    %842 = vmatpush1.bf16.msra.mxu0 0
    %843 = vmatprep.subr.bf16.mxu0 0
    %844 = vmatpush1.bf16.msra.mxu0 0
    %845 = vmatprep.subr.bf16.mxu0 0
    %846 = vmatpush1.bf16.msra.mxu0 0
    %847 = vmatprep.subr.bf16.mxu0 0
    %848 = vmatpush1.bf16.msra.mxu0 0
    %849 = vmatprep.subr.bf16.mxu0 0
    %850 = vmatpush1.bf16.msra.mxu0 0
    %851 = vmatprep.subr.bf16.mxu0 0
    %852 = vmatpush1.bf16.msra.mxu0 0
    %853 = vmatprep.subr.bf16.mxu0 0
    %854 = vmatpush1.bf16.msra.mxu0 0
    %855 = vmatprep.subr.bf16.mxu0 0
    %856 = vmatpush1.bf16.msra.mxu0 0
    %857 = vmatprep.subr.bf16.mxu0 0
    %858 = vmatpush1.bf16.msra.mxu0 0
    %859 = vmatprep.subr.bf16.mxu0 0
    %860 = vmatpush1.bf16.msra.mxu0 0
    %861 = vmatprep.mubr.bf16.mxu0 0
    %862 = vmatmul.mubr.bf16.gmra.mrb[0].mxu0 %v827
    %v863 = vpop.f32.mrb[0].mxu0
    %v864 = vadd.f32 %v817, %v863
    %v865 = vpop.f32.mrb[0].mxu0
    %v866 = vpop.f32.mrb[0].mxu0
    %v867 = vpop.f32.mrb[0].mxu0
    %868 = vdwg.mxu0
    %vm869 = vcmask 80896
    %870 = vst.msk [vmem:[#allocation2] sm:$0xff] %vm869, %v864
    // Predicated region
    $region30: #{tpu_custom_call.1} parent=1 // pred_check
      _
    $region31: #{tpu_custom_call.1} parent=1 // pred_check_branch
      %872 = sbr.rel (0) target = $region33
    $region32: #{tpu_custom_call.1} parent=1 // pred_region
      %s874 = ssub.s32 128, 128
      %875 = vsyncadd [#allocation3], %s874
      %s877 = sshll.u32 [#allocation2], 4
      %s878 = int_to_ptr.vmem [resolvable:$true] %s877
      %880 = dma.vmem_to_hbm [thread:$0]  %s878, 128, %s7, [#allocation3]
    $region33: #{tpu_custom_call.1} parent=1 // pred_fallthru
      _
    // Predicated region
    $region34: #{tpu_custom_call.1} parent=1 // pred_check
      _
    $region35: #{tpu_custom_call.1} parent=1 // pred_check_branch
      %882 = sbr.rel (0) target = $region37
    $region36: #{tpu_custom_call.1} parent=1 // pred_region
      %883 = dma.done [#allocation3], 128
    $region37: #{tpu_custom_call.1} parent=1 // pred_fallthru
      _
    %884 = vsyncpa [#allocation3], 1

</llo_original>
